<compile_context>
chip_gen: v5e
topology: v5e:2x2
jax: 0.10.0
libtpu: 0.0.40
codegen_flags: <defaults>
</compile_context>

<pallas_src>
import functools

import jax
import jax.numpy as jnp
from jax.experimental import pallas as pl
from jax.experimental.pallas import tpu as pltpu

_VMEM_LIMIT = 32 * 1024 * 1024


def _round_up(x, m):
    return (x + m - 1) // m * m


def _pick_tile(total, candidates=(512, 256, 128)):
    for c in candidates:
        if total % c == 0:
            return c
    return total


# ---------------------------------------------------------------------------
# Tiled matmul + fused BN (+ReLU) kernel     y = relu?((x @ w) * scale + bias)
# ---------------------------------------------------------------------------
def _matmul_bn_kernel(x_ref, w_ref, scale_ref, bias_ref, o_ref, acc_ref, *,
                      apply_relu):
    @pl.when(pl.program_id(2) == 0)
    def _():
        acc_ref[...] = jnp.zeros_like(acc_ref)

    acc_ref[...] += jnp.dot(x_ref[...], w_ref[...],
                            preferred_element_type=jnp.float32)

    @pl.when(pl.program_id(2) == pl.num_programs(2) - 1)
    def _():
        y = acc_ref[...] * scale_ref[...] + bias_ref[...]
        if apply_relu:
            y = jnp.maximum(y, 0.0)
        o_ref[...] = y.astype(o_ref.dtype)


def matmul_bn(x2d, w2d, scale, bias, apply_relu):
    M, K = x2d.shape
    Kw, C = w2d.shape
    assert K == Kw

    # Lane-dense padding of the reduction and output-channel dims.
    K_pad = _round_up(K, 128)
    C_pad = _round_up(C, 128)

    # Row tile: big enough to amortize per-step overhead, and >=2 tiles when
    # possible so both v7x TensorCores get work.  Multiple of 16 for bf16.
    if M >= 512:
        tm = 256
    elif M > 32:
        tm = _round_up(-(-M // 2), 16)
    else:
        tm = _round_up(max(M, 1), 16)
    M_pad = _round_up(M, tm)
    tn = _pick_tile(C_pad)
    tk = _pick_tile(K_pad)

    xb = jnp.pad(x2d, ((0, M_pad - M), (0, K_pad - K))).astype(jnp.bfloat16)
    wb = jnp.pad(w2d, ((0, K_pad - K), (0, C_pad - C))).astype(jnp.bfloat16)
    sc = jnp.pad(scale.reshape(1, C).astype(jnp.float32),
                 ((0, 0), (0, C_pad - C)))
    bs = jnp.pad(bias.reshape(1, C).astype(jnp.float32),
                 ((0, 0), (0, C_pad - C)))

    grid = (M_pad // tm, C_pad // tn, K_pad // tk)
    kernel = functools.partial(_matmul_bn_kernel, apply_relu=apply_relu)
    out = pl.pallas_call(
        kernel,
        out_shape=jax.ShapeDtypeStruct((M_pad, C_pad), jnp.float32),
        grid_spec=pltpu.PrefetchScalarGridSpec(
            num_scalar_prefetch=0,
            grid=grid,
            in_specs=[
                pl.BlockSpec((tm, tk), lambda i, j, k: (i, k)),
                pl.BlockSpec((tk, tn), lambda i, j, k: (k, j)),
                pl.BlockSpec((1, tn), lambda i, j, k: (0, j)),
                pl.BlockSpec((1, tn), lambda i, j, k: (0, j)),
            ],
            out_specs=pl.BlockSpec((tm, tn), lambda i, j, k: (i, j)),
            scratch_shapes=[pltpu.VMEM((tm, tn), jnp.float32)],
        ),
        compiler_params=pltpu.CompilerParams(
            dimension_semantics=("parallel", "parallel", "arbitrary"),
            vmem_limit_bytes=_VMEM_LIMIT,
        ),
    )(xb, wb, sc, bs)
    return out[:M, :C]


# ---------------------------------------------------------------------------
# SE block: tiled global-avg-pool accumulation + FC/ReLU/FC/sigmoid finalize
# ---------------------------------------------------------------------------
def _se_kernel(x_ref, w1_ref, b1_ref, w2_ref, b2_ref, o_ref, acc_ref, *,
               inv_hw):
    j = pl.program_id(1)

    @pl.when(j == 0)
    def _():
        acc_ref[...] = jnp.zeros_like(acc_ref)

    acc_ref[...] += jnp.sum(x_ref[...], axis=1)          # (1, thw, C) -> (1, C)

    @pl.when(j == pl.num_programs(1) - 1)
    def _():
        pooled = acc_ref[...] * inv_hw                   # squeeze (mean)
        h = jnp.dot(pooled, w1_ref[...], preferred_element_type=jnp.float32)
        h = jnp.maximum(h + b1_ref[...], 0.0)            # FC1 + ReLU
        s = jnp.dot(h, w2_ref[...], preferred_element_type=jnp.float32)
        s = jax.nn.sigmoid(s + b2_ref[...])              # FC2 + sigmoid
        o_ref[...] = s[:, None, :].astype(o_ref.dtype)


def se_scales(x3, w1, b1, w2, b2):
    """x3: [N, HW, C]  ->  SE gate s: [N, 1, C]."""
    N, HW, C = x3.shape
    hid = w1.shape[1]
    thw = min(512, _round_up(HW, 8))
    HW_pad = _round_up(HW, thw)
    xp = jnp.pad(x3, ((0, 0), (0, HW_pad - HW), (0, 0)))   # zeros: sum unchanged
    kernel = functools.partial(_se_kernel, inv_hw=1.0 / HW)
    return pl.pallas_call(
        kernel,
        out_shape=jax.ShapeDtypeStruct((N, 1, C), jnp.float32),
        grid_spec=pltpu.PrefetchScalarGridSpec(
            num_scalar_prefetch=0,
            grid=(N, HW_pad // thw),
            in_specs=[
                pl.BlockSpec((1, thw, C), lambda b, j: (b, j, 0)),
                pl.BlockSpec((C, hid), lambda b, j: (0, 0)),
                pl.BlockSpec((1, hid), lambda b, j: (0, 0)),
                pl.BlockSpec((hid, C), lambda b, j: (0, 0)),
                pl.BlockSpec((1, C), lambda b, j: (0, 0)),
            ],
            out_specs=pl.BlockSpec((1, 1, C), lambda b, j: (b, 0, 0)),
            scratch_shapes=[pltpu.VMEM((1, C), jnp.float32)],
        ),
        compiler_params=pltpu.CompilerParams(
            dimension_semantics=("parallel", "arbitrary"),
            vmem_limit_bytes=_VMEM_LIMIT,
        ),
    )(xp, w1, b1.reshape(1, hid), w2, b2.reshape(1, C))


# ---------------------------------------------------------------------------
# Fused SE-scale + residual add + ReLU, tiled over (N, HW)
# ---------------------------------------------------------------------------
def _scale_add_relu_kernel(x_ref, s_ref, r_ref, o_ref):
    y = x_ref[...] * s_ref[...] + r_ref[...]
    o_ref[...] = jnp.maximum(y, 0.0).astype(o_ref.dtype)


def scale_add_relu(x3, s, r3):
    """x3, r3: [N, HW, C];  s: [N, 1, C]  ->  relu(x3 * s + r3)."""
    N, HW, C = x3.shape
    thw = min(512, _round_up(HW, 8))
    HW_pad = _round_up(HW, thw)
    pad = ((0, 0), (0, HW_pad - HW), (0, 0))
    xp = jnp.pad(x3, pad)
    rp = jnp.pad(r3, pad)
    out = pl.pallas_call(
        _scale_add_relu_kernel,
        out_shape=jax.ShapeDtypeStruct((N, HW_pad, C), jnp.float32),
        grid_spec=pltpu.PrefetchScalarGridSpec(
            num_scalar_prefetch=0,
            grid=(N, HW_pad // thw),
            in_specs=[
                pl.BlockSpec((1, thw, C), lambda b, j: (b, j, 0)),
                pl.BlockSpec((1, 1, C), lambda b, j: (b, 0, 0)),
                pl.BlockSpec((1, thw, C), lambda b, j: (b, j, 0)),
            ],
            out_specs=pl.BlockSpec((1, thw, C), lambda b, j: (b, j, 0)),
        ),
        compiler_params=pltpu.CompilerParams(
            dimension_semantics=("parallel", "parallel"),
            vmem_limit_bytes=_VMEM_LIMIT,
        ),
    )(xp, s, rp)
    return out[:, :HW, :]


# ---------------------------------------------------------------------------
# Glue: im2col conv + BN fold (hot path = Pallas matmul above)
# ---------------------------------------------------------------------------
def conv_bn(x_nhwc, w_hwio, bn, stride, apply_relu):
    k = w_hwio.shape[0]
    N, H, W, Cin = x_nhwc.shape
    Cout = w_hwio.shape[-1]
    p = k // 2
    xp = jnp.pad(x_nhwc, ((0, 0), (p, p), (p, p), (0, 0)))
    Ho = (H + 2 * p - k) // stride + 1
    Wo = (W + 2 * p - k) // stride + 1
    cols = []
    for di in range(k):
        for dj in range(k):
            cols.append(xp[:, di:di + stride * Ho:stride,
                           dj:dj + stride * Wo:stride, :])
    patches = jnp.concatenate(cols, axis=-1)            # [N, Ho, Wo, k*k*Cin]
    x2d = patches.reshape(N * Ho * Wo, k * k * Cin)
    w2d = w_hwio.reshape(k * k * Cin, Cout)
    scale = bn["gamma"] / jnp.sqrt(bn["var"] + 1e-5)
    bias = bn["beta"] - bn["mean"] * scale
    y2d = matmul_bn(x2d, w2d, scale, bias, apply_relu)
    return y2d.reshape(N, Ho, Wo, Cout)


def residual_block_forward(x_nhwc, p, stride):
    out = conv_bn(x_nhwc, p["w1"], p["bn1"], stride, apply_relu=True)
    out = conv_bn(out, p["w2"], p["bn2"], 1, apply_relu=False)
    N, H, W, C = out.shape
    x3 = out.reshape(N, H * W, C)
    s = se_scales(x3, p["se_w1"], p["se_b1"], p["se_w2"], p["se_b2"])
    if "ws" in p:
        idn = conv_bn(x_nhwc, p["ws"], p["bns"], stride, apply_relu=False)
    else:
        idn = x_nhwc
    r3 = idn.reshape(N, H * W, C)
    y3 = scale_add_relu(x3, s, r3)
    return y3.reshape(N, H, W, C)


def make_layers_forward(x_nchw, params_list, strides):
    x = jnp.transpose(x_nchw, (0, 2, 3, 1)).astype(jnp.float32)  # NCHW -> NHWC
    for p, s in zip(params_list, strides):
        x = residual_block_forward(x, p, s)
    return jnp.transpose(x, (0, 3, 1, 2))                        # back to NCHW


# ---------------------------------------------------------------------------
# Deterministic parameter init (shapes from the module's __init__)
# ---------------------------------------------------------------------------
def _bn_params(key, c):
    k1, k2 = jax.random.split(key)
    return {
        "gamma": 1.0 + 0.1 * jax.random.normal(k1, (c,), jnp.float32),
        "beta": 0.1 * jax.random.normal(k2, (c,), jnp.float32),
        "mean": jnp.zeros((c,), jnp.float32),
        "var": jnp.ones((c,), jnp.float32),
    }


def init_make_layers(key, layers_configs, pre_layer_ch, se_reduction=4):
    _, k, out_c, stride0, n_blocks = layers_configs
    params_list, strides = [], []
    cin = pre_layer_ch
    for i in range(n_blocks):
        stride = stride0 if i == 0 else 1
        key, k1, k2, k3, k4, k5, k6, k7, k8 = jax.random.split(key, 9)
        hid = max(1, out_c // se_reduction)
        p = {
            "w1": jax.random.normal(k1, (k, k, cin, out_c), jnp.float32)
            * (2.0 / (k * k * cin)) ** 0.5,
            "bn1": _bn_params(k2, out_c),
            "w2": jax.random.normal(k3, (k, k, out_c, out_c), jnp.float32)
            * (2.0 / (k * k * out_c)) ** 0.5,
            "bn2": _bn_params(k4, out_c),
            "se_w1": jax.random.normal(k5, (out_c, hid), jnp.float32)
            * (2.0 / out_c) ** 0.5,
            "se_b1": jnp.zeros((hid,), jnp.float32),
            "se_w2": jax.random.normal(k6, (hid, out_c), jnp.float32)
            * (2.0 / hid) ** 0.5,
            "se_b2": jnp.zeros((out_c,), jnp.float32),
        }
        if stride != 1 or cin != out_c:
            p["ws"] = jax.random.normal(k7, (1, 1, cin, out_c), jnp.float32) \
                * (2.0 / cin) ** 0.5
            p["bns"] = _bn_params(k8, out_c)
        params_list.append(p)
        strides.append(stride)
        cin = out_c  # get_channel()
    return params_list, strides


if __name__ == "__main__":
    key = jax.random.PRNGKey(0)
    kx, kp = jax.random.split(key)

    # cfg = [input_ch, kernel_size, out_channels, stride, num_blocks]
    layers_configs = [8, 3, 8, 2, 2]
    pre_layer_ch = 4

    x = jax.random.normal(kx, (2, 4, 16, 16), jnp.float32)  # NCHW like PyTorch
    params_list, strides = init_make_layers(kp, layers_configs, pre_layer_ch)

    out = make_layers_forward(x, params_list, strides)
    out = jax.block_until_ready(out)
    assert out.shape == (2, 8, 8, 8), out.shape  # NCHW: stride-2 halves spatial
    assert jnp.all(jnp.isfinite(out))
    print("KERNEL_OK")
</pallas_src>

<mosaic_0001>
module attributes {stable_mosaic.version = 11 : i64} {
  func.func @_matmul_bn_kernel(%arg0: i32, %arg1: i32, %arg2: i32, %arg3: memref<64x128xbf16, #tpu.memory_space<vmem>>, %arg4: memref<128x128xbf16, #tpu.memory_space<vmem>>, %arg5: memref<1x128xf32, #tpu.memory_space<vmem>>, %arg6: memref<1x128xf32, #tpu.memory_space<vmem>>, %arg7: memref<64x128xf32, #tpu.memory_space<vmem>>, %arg8: memref<64x128xf32, #tpu.memory_space<vmem>>) attributes {dimension_semantics = [#tpu.dimension_semantics<parallel>, #tpu.dimension_semantics<parallel>, #tpu.dimension_semantics<arbitrary>], iteration_bounds = array<i64: 2, 1, 1>, scalar_prefetch = 0 : i64, scratch_operands = 1 : i64, tpu.core_type = #tpu.core_type<tc>, window_params = [{transform_indices = @transform_0, window_bounds = array<i64: 64, 128>}, {transform_indices = @transform_1, window_bounds = array<i64: 128, 128>}, {transform_indices = @transform_2, window_bounds = array<i64: 1, 128>}, {transform_indices = @transform_3, window_bounds = array<i64: 1, 128>}, {transform_indices = @transform_4, window_bounds = array<i64: 64, 128>}]} {
    %c0_i32 = arith.constant 0 : i32
    %0 = arith.cmpi eq, %arg2, %c0_i32 : i32
    %1 = arith.extui %0 : i1 to i32
    %c0_i32_0 = arith.constant 0 : i32
    %2 = arith.cmpi ne, %1, %c0_i32_0 : i32
    scf.if %2 {
      %cst_10 = arith.constant 0.000000e+00 : f32
      %12 = vector.broadcast %cst_10 : f32 to vector<64x128xf32>
      %c0_11 = arith.constant 0 : index
      %c0_12 = arith.constant 0 : index
      %13 = vector.load %arg8[%c0_11, %c0_12] : memref<64x128xf32, #tpu.memory_space<vmem>>, vector<64x128xf32>
      tpu.vector_store %arg8[%c0_11, %c0_12], %12 {strides = array<i32>} : memref<64x128xf32, #tpu.memory_space<vmem>>, vector<64x128xf32>,
    } else {
    }
    %c0 = arith.constant 0 : index
    %c0_1 = arith.constant 0 : index
    %3 = vector.load %arg8[%c0, %c0_1] : memref<64x128xf32, #tpu.memory_space<vmem>>, vector<64x128xf32>
    %c0_2 = arith.constant 0 : index
    %c0_3 = arith.constant 0 : index
    %4 = vector.load %arg3[%c0_2, %c0_3] : memref<64x128xbf16, #tpu.memory_space<vmem>>, vector<64x128xbf16>
    %c0_4 = arith.constant 0 : index
    %c0_5 = arith.constant 0 : index
    %5 = vector.load %arg4[%c0_4, %c0_5] : memref<128x128xbf16, #tpu.memory_space<vmem>>, vector<128x128xbf16>
    %cst = arith.constant dense<0.000000e+00> : vector<64x128xf32>
    %6 = tpu.matmul %4, %5, %cst {dimension_numbers = #tpu.dot_dimension_numbers<[1], [0], [0], [1], [0, 0, 1, 1], [], []>} : vector<64x128xbf16>, vector<128x128xbf16>, vector<64x128xf32> -> vector<64x128xf32>
    %7 = arith.addf %3, %6 : vector<64x128xf32>
    %c0_6 = arith.constant 0 : index
    %c0_7 = arith.constant 0 : index
    %8 = vector.load %arg8[%c0_6, %c0_7] : memref<64x128xf32, #tpu.memory_space<vmem>>, vector<64x128xf32>
    tpu.vector_store %arg8[%c0_6, %c0_7], %7 {strides = array<i32>} : memref<64x128xf32, #tpu.memory_space<vmem>>, vector<64x128xf32>,
    %c0_i32_8 = arith.constant 0 : i32
    %9 = arith.cmpi eq, %arg2, %c0_i32_8 : i32
    %10 = arith.extui %9 : i1 to i32
    %c0_i32_9 = arith.constant 0 : i32
    %11 = arith.cmpi ne, %10, %c0_i32_9 : i32
    scf.if %11 {
      %c0_10 = arith.constant 0 : index
      %c0_11 = arith.constant 0 : index
      %12 = vector.load %arg8[%c0_10, %c0_11] : memref<64x128xf32, #tpu.memory_space<vmem>>, vector<64x128xf32>
      %c0_12 = arith.constant 0 : index
      %c0_13 = arith.constant 0 : index
      %13 = vector.load %arg5[%c0_12, %c0_13] : memref<1x128xf32, #tpu.memory_space<vmem>>, vector<1x128xf32>
      %14 = vector.broadcast %13 : vector<1x128xf32> to vector<64x128xf32>
      %15 = arith.mulf %12, %14 : vector<64x128xf32>
      %c0_14 = arith.constant 0 : index
      %c0_15 = arith.constant 0 : index
      %16 = vector.load %arg6[%c0_14, %c0_15] : memref<1x128xf32, #tpu.memory_space<vmem>>, vector<1x128xf32>
      %17 = vector.broadcast %16 : vector<1x128xf32> to vector<64x128xf32>
      %18 = arith.addf %15, %17 : vector<64x128xf32>
      %cst_16 = arith.constant 0.000000e+00 : f32
      %19 = vector.broadcast %cst_16 : f32 to vector<64x128xf32>
      %20 = arith.maximumf %18, %19 : vector<64x128xf32>
      %c0_17 = arith.constant 0 : index
      %c0_18 = arith.constant 0 : index
      %21 = vector.load %arg7[%c0_17, %c0_18] : memref<64x128xf32, #tpu.memory_space<vmem>>, vector<64x128xf32>
      tpu.vector_store %arg7[%c0_17, %c0_18], %20 {strides = array<i32>} : memref<64x128xf32, #tpu.memory_space<vmem>>, vector<64x128xf32>,
    } else {
    }
    return
  }
  func.func @transform_0(%arg0: i32, %arg1: i32, %arg2: i32) -> (i32, i32) {
    %c0_i32 = arith.constant 0 : i32
    return %arg0, %arg2 : i32, i32
  }
  func.func @transform_1(%arg0: i32, %arg1: i32, %arg2: i32) -> (i32, i32) {
    %c0_i32 = arith.constant 0 : i32
    return %arg2, %arg1 : i32, i32
  }
  func.func @transform_2(%arg0: i32, %arg1: i32, %arg2: i32) -> (i32, i32) {
    %c0_i32 = arith.constant 0 : i32
    %c0_i32_0 = arith.constant 0 : i32
    return %c0_i32, %arg1 : i32, i32
  }
  func.func @transform_3(%arg0: i32, %arg1: i32, %arg2: i32) -> (i32, i32) {
    %c0_i32 = arith.constant 0 : i32
    %c0_i32_0 = arith.constant 0 : i32
    return %c0_i32, %arg1 : i32, i32
  }
  func.func @transform_4(%arg0: i32, %arg1: i32, %arg2: i32) -> (i32, i32) {
    %c0_i32 = arith.constant 0 : i32
    return %arg0, %arg1 : i32, i32
  }
}

</mosaic_0001>

<llo_original>
// kernel: tpu_custom_call.1
$region0: #{tpu_custom_call.1}
  #allocation0 [shape = 'u32[]', space=smem, size = 0x4, offset = 0x4, fixed_abs, tag = 'smem constant byte address 0x4 - core index']
  #allocation1 [shape = 'u32[72,128]{1,0:T(1,128)}', space=vmem, size = 0x9000, scoped, tag = 'internal scratch']
  #allocation2 [shape = 'f32[64,128]{1,0:T(8,128)}', space=vmem, size = 0x8000, scoped, tag = 'scratch operand']
  %s0 = inlined_call_operand.hbm [shape: bf16[128,128], index: 0, kind: input, shape index: {}]
  %s1 = inlined_call_operand.hbm [shape: bf16[128,128], index: 1, kind: input, shape index: {}]
  %s2 = inlined_call_operand.vmem [shape: f32[1,128], index: 2, kind: input, shape index: {}]
  %s3 = inlined_call_operand.vmem [shape: f32[1,128], index: 3, kind: input, shape index: {}]
  %s4 = inlined_call_operand.hbm [shape: f32[128,128], index: 4, kind: output, shape index: {}]
  %s5 = sld [smem:[#allocation0]]
  $region65: #{tpu_custom_call.1} parent=0
    _
  %s7 = ssub.s32 1, %s5
  %s8 = scalar_select 0, %s7, %s5
  $region1: #{tpu_custom_call.1} parent=0
    #allocation3 [shape = 'u8[32768]{0}', space=vmem, size = 0x8000, scoped, tag = 'input window, operand 0']
    #allocation4 [shape = 's32[2]{0}', space=sflag, size = 0x8, scoped, tag = 'scoped memory for tpu_custom_call.1']
    #allocation5 [shape = 's32[2]{0}', space=sflag, size = 0x8, scoped, tag = 'scoped memory for tpu_custom_call.1']
    #allocation6 [shape = 'u8[32768]{0}', space=vmem, size = 0x8000, scoped, tag = 'input window, operand 1, single buffered']
    #allocation7 [shape = 's32[1]{0}', space=sflag, size = 0x4, scoped, tag = 'scoped memory for tpu_custom_call.1']
    #allocation8 [shape = 'u8[65536]{0}', space=vmem, size = 0x10000, scoped, tag = 'output window, operand 0']
    %9 = vsyncpa [#allocation4], 0
    %s10 = scalar_lea.sflag [#allocation4], 1
    %11 = vsyncpa %s10, 0
    %12 = vsyncpa [#allocation7], 0
    %13 = vsyncpa [#allocation5], 0
    %s14 = scalar_lea.sflag [#allocation5], 1
    %15 = vsyncpa %s14, 0
    loop: start=0, step=1, limit=4
    $region2: #{tpu_custom_call.1} parent=1 // loop_pre_header
      _
    $region3: #{tpu_custom_call.1} parent=1 // loop_header
      %s17 = sphi 0, %s21
      %p18 = scmp.ge.s32.totalorder %s17, 4
      %s24 = sphi 0, %s43
      %s25 = sphi 0, %s39
      %s26 = sphi 0, %s35
      %s27 = sphi 0, %s24
      %s28 = sphi 0, %s25
      %s29 = sphi 0, %s26
      %s30 = sphi 0, %s27
      %s31 = sphi 0, %s28
      %s32 = sphi 0, %s29
      %s48 = sphi 0, %s50
      %s51 = sphi 0, %s48
      %s52 = sphi 0, %s51
      %s68 = sphi 0, %s52
      %s76 = sphi 0, %s78
      %s79 = sphi 0, %s76
      %s80 = sphi 0, %s79
      %s96 = sphi 0, %s80
      %s102 = sphi 0, %s104
      %s105 = sphi 0, %s102
      %s106 = sphi 0, %s105
      %s122 = sphi 0, %s106
      %s128 = sphi 0, %s130
      %s131 = sphi 0, %s128
      %s132 = sphi 0, %s131
      %s148 = sphi 0, %s132
      %s156 = sphi 0, %s158
      %s159 = sphi 0, %s156
      %s160 = sphi 0, %s159
      %s176 = sphi 0, %s160
    $region4: #{tpu_custom_call.1} parent=1 // loop_header_branch
      %20 = sbr.rel (%p18) target = $region8
    $region5: #{tpu_custom_call.1} parent=1 // loop_body
      %s22 = ssub.s32 %s17, 1
      %s23 = ssub.s32 %s17, 2
      %s33 = sadd.s32 1, %s26
      %p34 = scmp.ge.s32.totalorder %s33, 1
      %s35 = scalar_select %p34, 0, %s33
      %s36 = sadd.s32 1, %s25
      %s37 = scalar_select %p34, %s36, %s25
      %p38 = scmp.ge.s32.totalorder %s37, 1
      %s39 = scalar_select %p38, 0, %s37
      %s40 = sadd.s32 1, %s24
      %s41 = scalar_select %p38, %s40, %s24
      %p42 = scmp.ge.s32.totalorder %s41, 2
      %s43 = scalar_select %p42, 0, %s41
      %s44 = ssub.s32 %s24, %s43
      %s45 = ssub.s32 %s26, %s35
      %s46 = sor.u32 %s44, %s45
      %p47 = scmp.eq.s32.totalorder %s46, 0
      %s49 = sadd.s32 %s48, 1
      %s50 = scalar_select %p47, %s48, %s49
      %p53 = pneg %p47
      %p54 = scmp.eq.s32.totalorder %s17, 1
      %p55 = por %p53, %p54
      %p56 = scmp.ne.s32.totalorder %s48, %s51
      %p57 = scmp.eq.s32.totalorder %s17, 0
      %p58 = por %p56, %p57
      %p59 = scmp.ne.s32.totalorder %s48, %s51
      %p60 = scmp.eq.s32.totalorder %s22, 1
      %p61 = por %p59, %p60
      %p62 = scmp.ne.s32.totalorder %s51, %s52
      %p63 = scmp.eq.s32.totalorder %s22, 0
      %p64 = por %p62, %p63
      %p65 = scmp.ne.s32.totalorder %s51, %s52
      %p66 = scmp.eq.s32.totalorder %s23, 1
      %p67 = por %p65, %p66
      %p69 = scmp.ne.s32.totalorder %s52, %s68
      %p70 = scmp.eq.s32.totalorder %s23, 0
      %p71 = por %p69, %p70
      %s72 = ssub.s32 %s26, %s35
      %s73 = ssub.s32 %s25, %s39
      %s74 = sor.u32 %s72, %s73
      %p75 = scmp.eq.s32.totalorder %s74, 0
      %s77 = sadd.s32 %s76, 1
      %s78 = scalar_select %p75, %s76, %s77
      %p81 = pneg %p75
      %p82 = scmp.eq.s32.totalorder %s17, 1
      %p83 = por %p81, %p82
      %p84 = scmp.ne.s32.totalorder %s76, %s79
      %p85 = scmp.eq.s32.totalorder %s17, 0
      %p86 = por %p84, %p85
      %p87 = scmp.ne.s32.totalorder %s76, %s79
      %p88 = scmp.eq.s32.totalorder %s22, 1
      %p89 = por %p87, %p88
      %p90 = scmp.ne.s32.totalorder %s79, %s80
      %p91 = scmp.eq.s32.totalorder %s22, 0
      %p92 = por %p90, %p91
      %p93 = scmp.ne.s32.totalorder %s79, %s80
      %p94 = scmp.eq.s32.totalorder %s23, 1
      %p95 = por %p93, %p94
      %p97 = scmp.ne.s32.totalorder %s80, %s96
      %p98 = scmp.eq.s32.totalorder %s23, 0
      %p99 = por %p97, %p98
      %s100 = ssub.s32 %s25, %s39
      %p101 = scmp.eq.s32.totalorder %s100, 0
      %s103 = sadd.s32 %s102, 1
      %s104 = scalar_select %p101, %s102, %s103
      %p107 = pneg %p101
      %p108 = scmp.eq.s32.totalorder %s17, 1
      %p109 = por %p107, %p108
      %p110 = scmp.ne.s32.totalorder %s102, %s105
      %p111 = scmp.eq.s32.totalorder %s17, 0
      %p112 = por %p110, %p111
      %p113 = scmp.ne.s32.totalorder %s102, %s105
      %p114 = scmp.eq.s32.totalorder %s22, 1
      %p115 = por %p113, %p114
      %p116 = scmp.ne.s32.totalorder %s105, %s106
      %p117 = scmp.eq.s32.totalorder %s22, 0
      %p118 = por %p116, %p117
      %p119 = scmp.ne.s32.totalorder %s105, %s106
      %p120 = scmp.eq.s32.totalorder %s23, 1
      %p121 = por %p119, %p120
      %p123 = scmp.ne.s32.totalorder %s106, %s122
      %p124 = scmp.eq.s32.totalorder %s23, 0
      %p125 = por %p123, %p124
      %s126 = ssub.s32 %s25, %s39
      %p127 = scmp.eq.s32.totalorder %s126, 0
      %s129 = sadd.s32 %s128, 1
      %s130 = scalar_select %p127, %s128, %s129
      %p133 = pneg %p127
      %p134 = scmp.eq.s32.totalorder %s17, 1
      %p135 = por %p133, %p134
      %p136 = scmp.ne.s32.totalorder %s128, %s131
      %p137 = scmp.eq.s32.totalorder %s17, 0
      %p138 = por %p136, %p137
      %p139 = scmp.ne.s32.totalorder %s128, %s131
      %p140 = scmp.eq.s32.totalorder %s22, 1
      %p141 = por %p139, %p140
      %p142 = scmp.ne.s32.totalorder %s131, %s132
      %p143 = scmp.eq.s32.totalorder %s22, 0
      %p144 = por %p142, %p143
      %p145 = scmp.ne.s32.totalorder %s131, %s132
      %p146 = scmp.eq.s32.totalorder %s23, 1
      %p147 = por %p145, %p146
      %p149 = scmp.ne.s32.totalorder %s132, %s148
      %p150 = scmp.eq.s32.totalorder %s23, 0
      %p151 = por %p149, %p150
      %s152 = ssub.s32 %s24, %s43
      %s153 = ssub.s32 %s25, %s39
      %s154 = sor.u32 %s152, %s153
      %p155 = scmp.eq.s32.totalorder %s154, 0
      %s157 = sadd.s32 %s156, 1
      %s158 = scalar_select %p155, %s156, %s157
      %p161 = pneg %p155
      %p162 = scmp.eq.s32.totalorder %s17, 1
      %p163 = por %p161, %p162
      %p164 = scmp.ne.s32.totalorder %s156, %s159
      %p165 = scmp.eq.s32.totalorder %s17, 0
      %p166 = por %p164, %p165
      %p167 = scmp.ne.s32.totalorder %s156, %s159
      %p168 = scmp.eq.s32.totalorder %s22, 1
      %p169 = por %p167, %p168
      %p170 = scmp.ne.s32.totalorder %s159, %s160
      %p171 = scmp.eq.s32.totalorder %s22, 0
      %p172 = por %p170, %p171
      %p173 = scmp.ne.s32.totalorder %s159, %s160
      %p174 = scmp.eq.s32.totalorder %s23, 1
      %p175 = por %p173, %p174
      %p177 = scmp.ne.s32.totalorder %s160, %s176
      %p178 = scmp.eq.s32.totalorder %s23, 0
      %p179 = por %p177, %p178
      %p180 = scmp.le.s32.totalorder 1, %s17
      %p181 = scmp.lt.s32.totalorder %s17, 3
      %p182 = pnand %p180, %p181
      %p183 = pneg %p182
      // Predicated region
      $region9: #{tpu_custom_call.1} parent=5 // pred_check
        _
      $region10: #{tpu_custom_call.1} parent=5 // pred_check_branch
        %185 = sbr.rel (%p182) target = $region12
      $region11: #{tpu_custom_call.1} parent=5 // pred_region
        %s186 = ssub.s32 %s17, 1
        // Predicated region
        $region13: #{tpu_custom_call.1} parent=11 // pred_check
          %p187 = pneg %p92
        $region14: #{tpu_custom_call.1} parent=11 // pred_check_branch
          %189 = sbr.rel (%p187) target = $region16
        $region15: #{tpu_custom_call.1} parent=11 // pred_region
          %s190 = smul.u32 16, %s29
          %192 = vsyncadd [#allocation7], 0
          %s193 = sadd.s32 %s28, %s190
          %s194 = smul.addr %s193, 4
          %s195 = scalar_lea.hbm %s1, %s194
          %s196 = sshll.u32 %s195, 4
          %s197 = int_to_ptr.hbm [resolvable:$true] %s196
          %s198 = sshll.u32 [#allocation6], 4
          %s199 = int_to_ptr.vmem [resolvable:$true] %s198
          %204 = dma.hbm_to_vmem [thread:$0]  %s197, 1024, %s199, [#allocation7], 64, 64, 4
        $region16: #{tpu_custom_call.1} parent=11 // pred_fallthru
          _
        // Predicated region
        $region17: #{tpu_custom_call.1} parent=11 // pred_check
          %p205 = pneg %p118
        $region18: #{tpu_custom_call.1} parent=11 // pred_check_branch
          %207 = sbr.rel (%p205) target = $region20
        $region19: #{tpu_custom_call.1} parent=11 // pred_region
          %p208 = scmp.lt.s32.totalorder %s28, 0
          %s209 = scalar_select %p208, %s28, 0
          %s210 = scalar_lea.vmem %s2, %s209
        $region20: #{tpu_custom_call.1} parent=11 // pred_fallthru
          _
        // Predicated region
        $region21: #{tpu_custom_call.1} parent=11 // pred_check
          %p211 = pneg %p144
        $region22: #{tpu_custom_call.1} parent=11 // pred_check_branch
          %213 = sbr.rel (%p211) target = $region24
        $region23: #{tpu_custom_call.1} parent=11 // pred_region
          %p214 = scmp.lt.s32.totalorder %s28, 0
          %s215 = scalar_select %p214, %s28, 0
          %s216 = scalar_lea.vmem %s3, %s215
        $region24: #{tpu_custom_call.1} parent=11 // pred_fallthru
          _
      $region12: #{tpu_custom_call.1} parent=5 // pred_fallthru
        _
      %p217 = scmp.lt.s32.totalorder %s17, 2
      // Predicated region
      $region25: #{tpu_custom_call.1} parent=5 // pred_check
        %p218 = pneg %p217
      $region26: #{tpu_custom_call.1} parent=5 // pred_check_branch
        %220 = sbr.rel (%p218) target = $region28
      $region27: #{tpu_custom_call.1} parent=5 // pred_region
        // Predicated region
        $region29: #{tpu_custom_call.1} parent=27 // pred_check
          %p221 = pneg %p58
        $region30: #{tpu_custom_call.1} parent=27 // pred_check_branch
          %223 = sbr.rel (%p221) target = $region32
        $region31: #{tpu_custom_call.1} parent=27 // pred_region
          %s224 = sand.u32 %s48, 1
          %s225 = scalar_lea.sflag [#allocation4], %s224
          %s226 = sand.u32 %s48, 1
          %s227 = smul.addr %s226, 32
          %s228 = scalar_lea.vmem [#allocation3], %s227
          %s229 = smul.u32 8, %s24
          %231 = vsyncadd %s225, 0
          %s232 = sadd.s32 %s26, %s229
          %s233 = smul.addr %s232, 4
          %s234 = scalar_lea.hbm %s0, %s233
          %s235 = sshll.u32 %s234, 4
          %s236 = int_to_ptr.hbm [resolvable:$true] %s235
          %s237 = sshll.u32 %s228, 4
          %s238 = int_to_ptr.vmem [resolvable:$true] %s237
          %243 = dma.hbm_to_vmem [thread:$0]  %s236, 512, %s238, %s225, 64, 64, 4
        $region32: #{tpu_custom_call.1} parent=27 // pred_fallthru
          _
      $region28: #{tpu_custom_call.1} parent=5 // pred_fallthru
        _
      %p244 = scmp.le.s32.totalorder 1, %s17
      %p245 = scmp.lt.s32.totalorder %s17, 3
      %p246 = pnand %p244, %p245
      %p247 = pneg %p246
      // Predicated region
      $region33: #{tpu_custom_call.1} parent=5 // pred_check
        _
      $region34: #{tpu_custom_call.1} parent=5 // pred_check_branch
        %249 = sbr.rel (%p246) target = $region36
      $region35: #{tpu_custom_call.1} parent=5 // pred_region
        %s250 = ssub.s32 %s17, 1
        %s251 = sand.u32 %s51, 1
        %s252 = scalar_lea.sflag [#allocation4], %s251
        %s253 = sand.u32 %s51, 1
        %s254 = smul.addr %s253, 32
        %s255 = scalar_lea.vmem [#allocation3], %s254
        // Predicated region
        $region37: #{tpu_custom_call.1} parent=35 // pred_check
          %p256 = pneg %p64
        $region38: #{tpu_custom_call.1} parent=35 // pred_check_branch
          %258 = sbr.rel (%p256) target = $region40
        $region39: #{tpu_custom_call.1} parent=35 // pred_region
          %260 = dma.done %s252, 512
        $region40: #{tpu_custom_call.1} parent=35 // pred_fallthru
          _
        // Predicated region
        $region41: #{tpu_custom_call.1} parent=35 // pred_check
          %p261 = pneg %p92
        $region42: #{tpu_custom_call.1} parent=35 // pred_check_branch
          %263 = sbr.rel (%p261) target = $region44
        $region43: #{tpu_custom_call.1} parent=35 // pred_region
          %265 = dma.done [#allocation7], 1024
        $region44: #{tpu_custom_call.1} parent=35 // pred_fallthru
          _
        %s266 = sand.u32 %s51, 1
        %s267 = scalar_lea.sflag [#allocation4], %s266
        %s268 = sand.u32 %s51, 1
        %s269 = smul.addr %s268, 32
        %s270 = scalar_lea.vmem [#allocation3], %s269
        %p271 = pneg %p64
        %p272 = pneg %p61
        %p273 = pneg %p92
        %p274 = pneg %p89
        %p275 = scmp.lt.s32.totalorder %s28, 0
        %s276 = scalar_select %p275, %s28, 0
        %s277 = scalar_lea.vmem %s2, %s276
        %p278 = pneg %p118
        %p279 = pneg %p115
        %p280 = scmp.lt.s32.totalorder %s28, 0
        %s281 = scalar_select %p280, %s28, 0
        %s282 = scalar_lea.vmem %s3, %s281
        %p283 = pneg %p144
        %p284 = pneg %p141
        %p285 = pneg %p172
        %p286 = pneg %p169
        %s287 = sand.u32 %s159, 1
        %s288 = scalar_lea.sflag [#allocation5], %s287
        %s289 = sand.u32 %s159, 1
        %s290 = smul.addr %s289, 64
        %s291 = scalar_lea.vmem [#allocation8], %s290
        %s292 = smul.u32 8, %s27
        %s293 = smul.u32 16, %s29
        %p294 = scmp.lt.s32.totalorder %s28, 0
        %s295 = scalar_select %p294, %s28, 0
        %s296 = scalar_lea.vmem %s2, %s295
        %p297 = scmp.lt.s32.totalorder %s28, 0
        %s298 = scalar_select %p297, %s28, 0
        %s299 = scalar_lea.vmem %s3, %s298
        %s300 = smul.u32 8, %s27
        %p301 = scmp.eq.s32.totalorder %s29, 0
        // Predicated region
        $region45: #{tpu_custom_call.1} parent=35 // pred_check
          %p302 = pneg %p301
        $region46: #{tpu_custom_call.1} parent=35 // pred_check_branch
          %304 = sbr.rel (%p302) target = $region48
        $region47: #{tpu_custom_call.1} parent=35 // pred_region
          %305 = vst [vmem:[#allocation2] sm:$0xff] 0.0
          %306 = vst [vmem:[#allocation2 + $0x8] sm:$0xff] 0.0
          %307 = vst [vmem:[#allocation2 + $0x10] sm:$0xff] 0.0
          %308 = vst [vmem:[#allocation2 + $0x18] sm:$0xff] 0.0
          %309 = vst [vmem:[#allocation2 + $0x20] sm:$0xff] 0.0
          %310 = vst [vmem:[#allocation2 + $0x28] sm:$0xff] 0.0
          %311 = vst [vmem:[#allocation2 + $0x30] sm:$0xff] 0.0
          %312 = vst [vmem:[#allocation2 + $0x38] sm:$0xff] 0.0
        $region48: #{tpu_custom_call.1} parent=35 // pred_fallthru
          _
        %v313 = vld [vmem:[#allocation2] sm:$0xff]
        %v314 = vld [vmem:[#allocation2 + $0x8] sm:$0xff]
        %v315 = vld [vmem:[#allocation2 + $0x10] sm:$0xff]
        %v316 = vld [vmem:[#allocation2 + $0x18] sm:$0xff]
        %v317 = vld [vmem:[#allocation2 + $0x20] sm:$0xff]
        %v318 = vld [vmem:[#allocation2 + $0x28] sm:$0xff]
        %v319 = vld [vmem:[#allocation2 + $0x30] sm:$0xff]
        %v320 = vld [vmem:[#allocation2 + $0x38] sm:$0xff]
        %v321 = vld [vmem:[%s255] sm:$0xf]
        %v322 = vld [vmem:[%s255 + $0x4] sm:$0xf]
        %v323 = vld [vmem:[%s255 + $0x8] sm:$0xf]
        %v324 = vld [vmem:[%s255 + $0xc] sm:$0xf]
        %v325 = vld [vmem:[%s255 + $0x10] sm:$0xf]
        %v326 = vld [vmem:[%s255 + $0x14] sm:$0xf]
        %v327 = vld [vmem:[%s255 + $0x18] sm:$0xf]
        %v328 = vld [vmem:[%s255 + $0x1c] sm:$0xf]
        %v329 = vld [vmem:[#allocation6] sm:$0xf]
        %v330 = vld [vmem:[#allocation6 + $0x4] sm:$0xf]
        %v331 = vld [vmem:[#allocation6 + $0x8] sm:$0xf]
        %v332 = vld [vmem:[#allocation6 + $0xc] sm:$0xf]
        %v333 = vld [vmem:[#allocation6 + $0x10] sm:$0xf]
        %v334 = vld [vmem:[#allocation6 + $0x14] sm:$0xf]
        %v335 = vld [vmem:[#allocation6 + $0x18] sm:$0xf]
        %v336 = vld [vmem:[#allocation6 + $0x1c] sm:$0xf]
        %v337 = vld [vmem:[#allocation6 + $0x20] sm:$0xf]
        %v338 = vld [vmem:[#allocation6 + $0x24] sm:$0xf]
        %v339 = vld [vmem:[#allocation6 + $0x28] sm:$0xf]
        %v340 = vld [vmem:[#allocation6 + $0x2c] sm:$0xf]
        %v341 = vld [vmem:[#allocation6 + $0x30] sm:$0xf]
        %v342 = vld [vmem:[#allocation6 + $0x34] sm:$0xf]
        %v343 = vld [vmem:[#allocation6 + $0x38] sm:$0xf]
        %v344 = vld [vmem:[#allocation6 + $0x3c] sm:$0xf]
        %v353 = vunpack.c.l.b16 %v321
        %v354 = vunpack.c.l.b16 %v322
        %v355 = vunpack.c.l.b16 %v323
        %v356 = vunpack.c.l.b16 %v324
        %v357 = vunpack.c.l.b16 %v325
        %v358 = vunpack.c.l.b16 %v326
        %v359 = vunpack.c.l.b16 %v327
        %v360 = vunpack.c.l.b16 %v328
        %v361 = vpack.c.b16 %v354, %v353
        %v362 = vpack.c.b16 %v356, %v355
        %v363 = vpack.c.b16 %v358, %v357
        %v364 = vpack.c.b16 %v360, %v359
        %v385 = vunpack.c.l.b16 %v329
        %v386 = vunpack.c.l.b16 %v330
        %v387 = vunpack.c.l.b16 %v331
        %v388 = vunpack.c.l.b16 %v332
        %v389 = vunpack.c.l.b16 %v333
        %v390 = vunpack.c.l.b16 %v334
        %v391 = vunpack.c.l.b16 %v335
        %v392 = vunpack.c.l.b16 %v336
        %v393 = vunpack.c.l.b16 %v337
        %v394 = vunpack.c.l.b16 %v338
        %v395 = vunpack.c.l.b16 %v339
        %v396 = vunpack.c.l.b16 %v340
        %v397 = vunpack.c.l.b16 %v341
        %v398 = vunpack.c.l.b16 %v342
        %v399 = vunpack.c.l.b16 %v343
        %v400 = vunpack.c.l.b16 %v344
        %v401 = vpack.c.b16 %v386, %v385
        %v402 = vpack.c.b16 %v388, %v387
        %v403 = vpack.c.b16 %v390, %v389
        %v404 = vpack.c.b16 %v392, %v391
        %v405 = vpack.c.b16 %v394, %v393
        %v406 = vpack.c.b16 %v396, %v395
        %v407 = vpack.c.b16 %v398, %v397
        %v408 = vpack.c.b16 %v400, %v399
        %417 = vmatpush.bf16.msra.mxu0 %v408
        %418 = vmatpush.bf16.msra.mxu0 %v407
        %419 = vmatpush.bf16.msra.mxu0 %v406
        %420 = vmatpush.bf16.msra.mxu0 %v405
        %421 = vmatpush.bf16.msra.mxu0 %v404
        %422 = vmatpush.bf16.msra.mxu0 %v403
        %423 = vmatpush.bf16.msra.mxu0 %v402
        %424 = vmatpush.bf16.msra.mxu0 %v401
        %425 = vmatmul.bf16.gmra.mxu0 %v361
        %v426 = vpop.f32.mrf.mxu0
        %v427 = vadd.f32 0.0, %v426
        %v428 = vpop.f32.mrf.mxu0
        %v429 = vadd.f32 0.0, %v428
        %430 = vmatmul.bf16.gmra.mxu0 %v362
        %v431 = vpop.f32.mrf.mxu0
        %v432 = vadd.f32 0.0, %v431
        %v433 = vpop.f32.mrf.mxu0
        %v434 = vadd.f32 0.0, %v433
        %435 = vmatmul.bf16.gmra.mxu0 %v363
        %v436 = vpop.f32.mrf.mxu0
        %v437 = vadd.f32 0.0, %v436
        %v438 = vpop.f32.mrf.mxu0
        %v439 = vadd.f32 0.0, %v438
        %440 = vmatmul.bf16.gmra.mxu0 %v364
        %v441 = vpop.f32.mrf.mxu0
        %v442 = vadd.f32 0.0, %v441
        %v443 = vpop.f32.mrf.mxu0
        %v444 = vadd.f32 0.0, %v443
        %445 = vdwg.mxu0
        %v446 = vadd.f32 %v313, %v427
        %v447 = vadd.f32 %v314, %v429
        %v448 = vadd.f32 %v315, %v432
        %v449 = vadd.f32 %v316, %v434
        %v450 = vadd.f32 %v317, %v437
        %v451 = vadd.f32 %v318, %v439
        %v452 = vadd.f32 %v319, %v442
        %v453 = vadd.f32 %v320, %v444
        %454 = vst [vmem:[#allocation2] sm:$0xff] %v446
        %455 = vst [vmem:[#allocation2 + $0x8] sm:$0xff] %v447
        %456 = vst [vmem:[#allocation2 + $0x10] sm:$0xff] %v448
        %457 = vst [vmem:[#allocation2 + $0x18] sm:$0xff] %v449
        %458 = vst [vmem:[#allocation2 + $0x20] sm:$0xff] %v450
        %459 = vst [vmem:[#allocation2 + $0x28] sm:$0xff] %v451
        %460 = vst [vmem:[#allocation2 + $0x30] sm:$0xff] %v452
        %461 = vst [vmem:[#allocation2 + $0x38] sm:$0xff] %v453
        // Predicated region
        $region49: #{tpu_custom_call.1} parent=35 // pred_check
          %p462 = pneg %p301
        $region50: #{tpu_custom_call.1} parent=35 // pred_check_branch
          %464 = sbr.rel (%p462) target = $region52
        $region51: #{tpu_custom_call.1} parent=35 // pred_region
          %v465 = vld [vmem:[#allocation2] sm:$0xff]
          %v466 = vld [vmem:[#allocation2 + $0x8] sm:$0xff]
          %v467 = vld [vmem:[#allocation2 + $0x10] sm:$0xff]
          %v468 = vld [vmem:[#allocation2 + $0x18] sm:$0xff]
          %v469 = vld [vmem:[#allocation2 + $0x20] sm:$0xff]
          %v470 = vld [vmem:[#allocation2 + $0x28] sm:$0xff]
          %v471 = vld [vmem:[#allocation2 + $0x30] sm:$0xff]
          %v472 = vld [vmem:[#allocation2 + $0x38] sm:$0xff]
          %v473 = vld [vmem:[%s296] sm:$0x1]
          %v475 = vperm.slane %v473, 0
          %v477 = vmul.f32 %v465, %v475
          %v478 = vmul.f32 %v466, %v475
          %v479 = vmul.f32 %v467, %v475
          %v480 = vmul.f32 %v468, %v475
          %v481 = vmul.f32 %v469, %v475
          %v482 = vmul.f32 %v470, %v475
          %v483 = vmul.f32 %v471, %v475
          %v484 = vmul.f32 %v472, %v475
          %v485 = vld [vmem:[%s299] sm:$0x1]
          %v487 = vperm.slane %v485, 0
          %v489 = vadd.f32 %v477, %v487
          %v490 = vadd.f32 %v478, %v487
          %v491 = vadd.f32 %v479, %v487
          %v492 = vadd.f32 %v480, %v487
          %v493 = vadd.f32 %v481, %v487
          %v494 = vadd.f32 %v482, %v487
          %v495 = vadd.f32 %v483, %v487
          %v496 = vadd.f32 %v484, %v487
          %v497 = vmax.f32 %v489, 0.0
          %v498 = vmax.f32 %v490, 0.0
          %v499 = vmax.f32 %v491, 0.0
          %v500 = vmax.f32 %v492, 0.0
          %v501 = vmax.f32 %v493, 0.0
          %v502 = vmax.f32 %v494, 0.0
          %v503 = vmax.f32 %v495, 0.0
          %v504 = vmax.f32 %v496, 0.0
          %505 = vst [vmem:[%s291] sm:$0xff] %v497
          %506 = vst [vmem:[%s291 + $0x8] sm:$0xff] %v498
          %507 = vst [vmem:[%s291 + $0x10] sm:$0xff] %v499
          %508 = vst [vmem:[%s291 + $0x18] sm:$0xff] %v500
          %509 = vst [vmem:[%s291 + $0x20] sm:$0xff] %v501
          %510 = vst [vmem:[%s291 + $0x28] sm:$0xff] %v502
          %511 = vst [vmem:[%s291 + $0x30] sm:$0xff] %v503
          %512 = vst [vmem:[%s291 + $0x38] sm:$0xff] %v504
        $region52: #{tpu_custom_call.1} parent=35 // pred_fallthru
          _
        %s513 = sand.u32 %s159, 1
        %s514 = scalar_lea.sflag [#allocation5], %s513
        %s515 = sand.u32 %s159, 1
        %s516 = smul.addr %s515, 64
        %s517 = scalar_lea.vmem [#allocation8], %s516
        // Predicated region
        $region53: #{tpu_custom_call.1} parent=35 // pred_check
          %p518 = pneg %p169
        $region54: #{tpu_custom_call.1} parent=35 // pred_check_branch
          %520 = sbr.rel (%p518) target = $region56
        $region55: #{tpu_custom_call.1} parent=35 // pred_region
          %s521 = smul.u32 8, %s27
          %523 = vsyncadd %s514, 0
          %s524 = sadd.s32 %s28, %s521
          %s525 = smul.addr %s524, 8
          %s526 = scalar_lea.hbm %s4, %s525
          %s527 = sshll.u32 %s517, 4
          %s528 = int_to_ptr.vmem [resolvable:$true] %s527
          %s529 = sshll.u32 %s526, 4
          %s530 = int_to_ptr.hbm [resolvable:$true] %s529
          %535 = dma.vmem_to_hbm [thread:$0]  %s528, 1024, %s530, %s514, 128, 128, 8
        $region56: #{tpu_custom_call.1} parent=35 // pred_fallthru
          _
      $region36: #{tpu_custom_call.1} parent=5 // pred_fallthru
        _
      %p536 = scmp.le.s32.totalorder 2, %s17
      // Predicated region
      $region57: #{tpu_custom_call.1} parent=5 // pred_check
        %p537 = pneg %p536
      $region58: #{tpu_custom_call.1} parent=5 // pred_check_branch
        %539 = sbr.rel (%p537) target = $region60
      $region59: #{tpu_custom_call.1} parent=5 // pred_region
        %s540 = ssub.s32 %s17, 2
        // Predicated region
        $region61: #{tpu_custom_call.1} parent=59 // pred_check
          %p541 = pneg %p175
        $region62: #{tpu_custom_call.1} parent=59 // pred_check_branch
          %543 = sbr.rel (%p541) target = $region64
        $region63: #{tpu_custom_call.1} parent=59 // pred_region
          %s544 = sand.u32 %s160, 1
          %s545 = scalar_lea.sflag [#allocation5], %s544
          %s546 = sand.u32 %s160, 1
          %s547 = smul.addr %s546, 64
          %s548 = scalar_lea.vmem [#allocation8], %s547
          %550 = dma.done %s545, 1024
        $region64: #{tpu_custom_call.1} parent=59 // pred_fallthru
          _
      $region60: #{tpu_custom_call.1} parent=5 // pred_fallthru
        _
    $region6: #{tpu_custom_call.1} parent=1 // loop_footer
      %s21 = sadd.s32 1, %s17
    $region7: #{tpu_custom_call.1} parent=1 // loop_footer_branch
      %16 = sbr.rel target = $region3
    $region8: #{tpu_custom_call.1} parent=1 // loop_exit
      _
    %551 = vsyncpa [#allocation4], 1
    %s552 = scalar_lea.sflag [#allocation4], 1
    %553 = vsyncpa %s552, 1
    %554 = vsyncpa [#allocation7], 1
    %555 = vsyncpa [#allocation5], 1
    %s556 = scalar_lea.sflag [#allocation5], 1
    %557 = vsyncpa %s556, 1

</llo_original>
